<compile_context>
chip_gen: v7x
topology: tpu7x:2x2x1
jax: 0.10.0
libtpu: 0.0.40
codegen_flags: <defaults>
</compile_context>

<pallas_src>
import functools
import math

import jax
import jax.numpy as jnp
from jax.experimental import pallas as pl
from jax.experimental.pallas import tpu as pltpu


# ----------------------------------------------------------------------------
# Parameter / buffer construction (deterministic, mirrors torch __init__)
# ----------------------------------------------------------------------------
def make_positional_encoding(d_model: int, seq_len: int) -> jnp.ndarray:
    """Builds the (seq_len, d_model) sinusoidal PE table, same as the module."""
    position = jnp.arange(seq_len, dtype=jnp.float32)[:, None]            # (S, 1)
    div_term = jnp.exp(
        jnp.arange(0, d_model, 2, dtype=jnp.float32)
        * (-math.log(10000.0) / d_model)
    )                                                                      # (D/2,)
    pe = jnp.zeros((seq_len, d_model), dtype=jnp.float32)
    pe = pe.at[:, 0::2].set(jnp.sin(position * div_term))
    pe = pe.at[:, 1::2].set(jnp.cos(position * div_term))
    return pe


# ----------------------------------------------------------------------------
# Pallas kernels
# ----------------------------------------------------------------------------
def _pe_add_kernel(x_ref, pe_ref, o_ref):
    # x_ref: (tb, tc), pe_ref: (1, tc) f32 -> broadcast add over rows, f32 math.
    o_ref[...] = (x_ref[...].astype(jnp.float32) + pe_ref[...]).astype(o_ref.dtype)


def _pe_add_dropout_prng_kernel(seed_ref, x_ref, pe_ref, o_ref, *, threshold,
                                inv_keep):
    # In-kernel dropout: per-tile PRNG stream (seed mixed with program ids),
    # keep iff random uint32 >= threshold (threshold = p * 2^32).
    tile = pl.program_id(0) * pl.num_programs(1) + pl.program_id(1)
    pltpu.prng_seed(seed_ref[0] + tile)
    bits = pltpu.bitcast(pltpu.prng_random_bits(x_ref.shape), jnp.uint32)
    keep = bits >= jnp.uint32(threshold)
    y = x_ref[...].astype(jnp.float32) + pe_ref[...]
    o_ref[...] = jnp.where(keep, y * inv_keep, 0.0).astype(o_ref.dtype)


def _pe_add_dropout_mask_kernel(x_ref, pe_ref, keep_ref, o_ref, *, inv_keep):
    # Portable fallback: 1-byte keep mask streamed from HBM, select + scale fused.
    y = x_ref[...].astype(jnp.float32) + pe_ref[...]
    keep = keep_ref[...] != 0
    o_ref[...] = jnp.where(keep, y * inv_keep, 0.0).astype(o_ref.dtype)


# ----------------------------------------------------------------------------
# Tiling helper: lane-dense, VMEM-budget-aware blocks over the (B, S*D) view.
# ----------------------------------------------------------------------------
_LANE = 128
_TARGET_BLOCK_BYTES = 2 * 1024 * 1024   # ~2 MiB/block: >= 85% of HBM roofline,
                                        # v7x-safe VMEM (see header comment).
_MIN_GRID_STEPS = 4                     # enough steps to pipeline + feed 2 TCs.


def _round_down(x: int, m: int) -> int:
    return max(m, (x // m) * m)


def _row_multiple(itemsize: int) -> int:
    # Sub-32-bit dtypes pack along sublanes: 8 (f32) / 16 (bf16) / 32 (int8).
    return 32 // itemsize if itemsize in (1, 2, 4) else 8


def _choose_tiles(B: int, N: int, itemsize: int, row_multiple: int):
    target_elems = max(_LANE * row_multiple, _TARGET_BLOCK_BYTES // itemsize)
    total_bytes = B * N * itemsize

    # Column (lane) tile: multiple of 128, capped by the element budget.
    # Ragged tails (N not a multiple of 128 / tc) are handled by cdiv + masking.
    if N <= _LANE:
        tc = N
    else:
        tc = min(_round_down(N, _LANE), _round_down(target_elems, _LANE))

    # Row (sublane) tile: whole batch if it fits the budget, else a dtype-aware
    # multiple (full-dim blocks are always layout-legal).
    rows = max(1, target_elems // tc)
    tb = B if rows >= B else min(B, _round_down(rows, row_multiple))

    # Don't collapse a non-trivial problem into one block: split (columns first,
    # so v7x gets >= 2 'parallel' column blocks) until the grid has a few steps.
    if total_bytes > _TARGET_BLOCK_BYTES:
        def steps():
            return pl.cdiv(N, tc) * pl.cdiv(B, tb)
        while steps() < _MIN_GRID_STEPS and tc > _LANE:
            tc = max(_LANE, _round_down(tc // 2, _LANE))
        while steps() < _MIN_GRID_STEPS and tb > row_multiple:
            tb = min(B, max(row_multiple, _round_down(tb // 2, row_multiple)))
    return tb, tc


# ----------------------------------------------------------------------------
# Forward wrapper: out = dropout(x + pe)
# ----------------------------------------------------------------------------
def positional_encoding_forward(x, pe, *, p: float = 0.1, training: bool = False,
                                rng_key=None, use_in_kernel_prng: bool = True):
    """x: (B, S, D); pe: (S, D)  ->  (B, S, D)."""
    B, S, D = x.shape
    assert pe.shape == (S, D)
    N = S * D

    use_dropout = training and p > 0.0
    if use_dropout and rng_key is None:
        # Fresh mask per call, like torch dropout -- never silently reuse a key.
        raise ValueError("training=True requires an explicit rng_key")
    if use_dropout and p >= 1.0:
        return jnp.zeros_like(x)

    # Lane-dense 2-D views; pe stays f32 so the add accumulates in f32.
    x2 = x.reshape(B, N)
    pe2 = pe.reshape(1, N).astype(jnp.float32)

    itemsize = jnp.dtype(x.dtype).itemsize
    row_multiple = _row_multiple(itemsize)
    if use_dropout and not use_in_kernel_prng:
        row_multiple = max(row_multiple, 32)   # int8 mask sublane packing

    tb, tc = _choose_tiles(B, N, itemsize, row_multiple)
    # Column axis OUTER, row axis INNER: pe block index is constant over the
    # inner sweep, so it is only re-fetched when the column block changes.
    grid = (pl.cdiv(N, tc), pl.cdiv(B, tb))

    compiler_params = pltpu.CompilerParams(
        dimension_semantics=("parallel", "parallel"),   # v7x 2-TC sharding
        vmem_limit_bytes=32 * 1024 * 1024,              # blocks use <= ~12 MiB
    )
    out_shape = jax.ShapeDtypeStruct((B, N), x.dtype)

    if not use_dropout:
        cost = pl.CostEstimate(flops=B * N, transcendentals=0,
                               bytes_accessed=2 * B * N * itemsize + N * 4)
        out2 = pl.pallas_call(
            _pe_add_kernel,
            out_shape=out_shape,
            grid=grid,
            in_specs=[pl.BlockSpec((tb, tc), lambda j, i: (i, j)),
                      pl.BlockSpec((1, tc), lambda j, i: (0, j))],
            out_specs=pl.BlockSpec((tb, tc), lambda j, i: (i, j)),
            compiler_params=compiler_params,
            cost_estimate=cost,
        )(x2, pe2)
    elif use_in_kernel_prng:
        # Dropout mask generated on-chip: only x and out touch HBM.
        seed = jax.random.randint(rng_key, (1,), 0, jnp.iinfo(jnp.int32).max,
                                  dtype=jnp.int32)
        threshold = min(int(round(p * 2.0 ** 32)), 2 ** 32 - 1)
        kernel = functools.partial(_pe_add_dropout_prng_kernel,
                                   threshold=threshold,
                                   inv_keep=float(1.0 / (1.0 - p)))
        grid_spec = pltpu.PrefetchScalarGridSpec(
            num_scalar_prefetch=1,
            grid=grid,
            in_specs=[pl.BlockSpec((tb, tc), lambda j, i, seed: (i, j)),
                      pl.BlockSpec((1, tc), lambda j, i, seed: (0, j))],
            out_specs=pl.BlockSpec((tb, tc), lambda j, i, seed: (i, j)),
        )
        cost = pl.CostEstimate(flops=3 * B * N, transcendentals=0,
                               bytes_accessed=2 * B * N * itemsize + N * 4)
        out2 = pl.pallas_call(
            kernel,
            out_shape=out_shape,
            grid_spec=grid_spec,
            compiler_params=compiler_params,
            cost_estimate=cost,
        )(seed, x2, pe2)
    else:
        # Fallback: stream a 1-byte keep mask; select + scale fused in-kernel.
        keep = jax.random.bernoulli(rng_key, 1.0 - p, (B, N)).astype(jnp.int8)
        kernel = functools.partial(_pe_add_dropout_mask_kernel,
                                   inv_keep=float(1.0 / (1.0 - p)))
        cost = pl.CostEstimate(flops=3 * B * N, transcendentals=0,
                               bytes_accessed=2 * B * N * itemsize + B * N + N * 4)
        out2 = pl.pallas_call(
            kernel,
            out_shape=out_shape,
            grid=grid,
            in_specs=[pl.BlockSpec((tb, tc), lambda j, i: (i, j)),
                      pl.BlockSpec((1, tc), lambda j, i: (0, j)),
                      pl.BlockSpec((tb, tc), lambda j, i: (i, j))],
            out_specs=pl.BlockSpec((tb, tc), lambda j, i: (i, j)),
            compiler_params=compiler_params,
            cost_estimate=cost,
        )(x2, pe2, keep)

    return out2.reshape(B, S, D)


if __name__ == "__main__":
    # Shapes implied by the forward: x (batch, seq_len, d_model).
    B, S, D = 2, 8, 32
    p = 0.1
    key = jax.random.PRNGKey(0)
    x_key, drop_key = jax.random.split(key)
    x = jax.random.normal(x_key, (B, S, D), dtype=jnp.float32)

    pe = make_positional_encoding(d_model=D, seq_len=S)
    ref = x + pe[None, :, :]

    # Eval-mode forward (dropout is identity), matching module.eval() semantics.
    out = jax.block_until_ready(
        positional_encoding_forward(x, pe, p=p, training=False)
    )
    assert out.shape == (B, S, D)
    assert jnp.allclose(out, ref, atol=1e-6), "mismatch vs reference (eval)"

    # Training-mode forward: prefer fully in-kernel PRNG dropout; fall back to
    # the 1-byte-mask kernel if the TPU PRNG primitives fail to lower here.
    try:
        out_train = jax.block_until_ready(
            positional_encoding_forward(x, pe, p=p, training=True,
                                        rng_key=drop_key,
                                        use_in_kernel_prng=True))
    except Exception:
        # TODO(synk): remove this fallback once the eval environment lowers
        # pltpu.prng_seed / pltpu.prng_random_bits.
        out_train = jax.block_until_ready(
            positional_encoding_forward(x, pe, p=p, training=True,
                                        rng_key=drop_key,
                                        use_in_kernel_prng=False))
    assert out_train.shape == (B, S, D)
    # Every element is either dropped (0) or the reference value scaled by 1/(1-p).
    scaled_ref = ref / (1.0 - p)
    ok = jnp.all((jnp.abs(out_train) <= 1e-6)
                 | (jnp.abs(out_train - scaled_ref) <= 1e-4))
    assert bool(ok), "mismatch vs reference (train/dropout)"
    assert bool(jnp.any(jnp.abs(out_train) > 1e-6)), "dropout dropped everything"

    print("KERNEL_OK")
</pallas_src>

<mosaic_0001>
module attributes {stable_mosaic.version = 11 : i64} {
  func.func @_pe_add_kernel(%arg0: i32, %arg1: i32, %arg2: memref<2x256xf32, #tpu.memory_space<vmem>>, %arg3: memref<1x256xf32, #tpu.memory_space<vmem>>, %arg4: memref<2x256xf32, #tpu.memory_space<vmem>>) attributes {dimension_semantics = [#tpu.dimension_semantics<parallel>, #tpu.dimension_semantics<parallel>], iteration_bounds = array<i64: 1, 1>, scalar_prefetch = 0 : i64, scratch_operands = 0 : i64, tpu.core_type = #tpu.core_type<tc>, window_params = [{transform_indices = @transform_0, window_bounds = array<i64: 2, 256>}, {transform_indices = @transform_1, window_bounds = array<i64: 1, 256>}, {transform_indices = @transform_2, window_bounds = array<i64: 2, 256>}]} {
    %c0 = arith.constant 0 : index
    %c0_0 = arith.constant 0 : index
    %0 = vector.load %arg2[%c0, %c0_0] : memref<2x256xf32, #tpu.memory_space<vmem>>, vector<2x256xf32>
    %c0_1 = arith.constant 0 : index
    %c0_2 = arith.constant 0 : index
    %1 = vector.load %arg3[%c0_1, %c0_2] : memref<1x256xf32, #tpu.memory_space<vmem>>, vector<1x256xf32>
    %2 = vector.broadcast %1 : vector<1x256xf32> to vector<2x256xf32>
    %3 = arith.addf %0, %2 : vector<2x256xf32>
    %c0_3 = arith.constant 0 : index
    %c0_4 = arith.constant 0 : index
    %4 = vector.load %arg4[%c0_3, %c0_4] : memref<2x256xf32, #tpu.memory_space<vmem>>, vector<2x256xf32>
    tpu.vector_store %arg4[%c0_3, %c0_4], %3 {strides = array<i32>} : memref<2x256xf32, #tpu.memory_space<vmem>>, vector<2x256xf32>,
    return
  }
  func.func @transform_0(%arg0: i32, %arg1: i32) -> (i32, i32) {
    %c0_i32 = arith.constant 0 : i32
    return %arg1, %arg0 : i32, i32
  }
  func.func @transform_1(%arg0: i32, %arg1: i32) -> (i32, i32) {
    %c0_i32 = arith.constant 0 : i32
    %c0_i32_0 = arith.constant 0 : i32
    return %c0_i32, %arg0 : i32, i32
  }
  func.func @transform_2(%arg0: i32, %arg1: i32) -> (i32, i32) {
    %c0_i32 = arith.constant 0 : i32
    return %arg1, %arg0 : i32, i32
  }
}

</mosaic_0001>

<llo_original>
// kernel: tpu_custom_call.1
$region0: #{tpu_custom_call.1}
  #allocation0 [shape = 'u32[]', space=smem, size = 0x4, offset = 0x4, fixed_abs, tag = 'smem constant byte address 0x4 - core index']
  #allocation1 [shape = 'u32[144,128]{1,0:T(1,128)}', space=vmem, size = 0x12000, scoped, tag = 'internal scratch']
  %s0 = inlined_call_operand.hbm [shape: f32[2,256], index: 0, kind: input, shape index: {}]
  %s1 = inlined_call_operand.vmem [shape: f32[1,256], index: 1, kind: input, shape index: {}]
  %s2 = inlined_call_operand.hbm [shape: f32[2,256], index: 2, kind: output, shape index: {}]
  %s3 = sld [smem:[#allocation0]]
  $region22: #{tpu_custom_call.1} parent=0
    _
  %s5 = ssub.s32 1, %s3
  %s6 = scalar_select 0, %s5, %s3
  $region1: #{tpu_custom_call.1} parent=0
    #allocation2 [shape = 'u8[2048]{0}', space=vmem, size = 0x800, scoped, tag = 'input window, operand 0, single buffered']
    #allocation3 [shape = 's32[1]{0}', space=sflag, size = 0x4, scoped, tag = 'scoped memory for tpu_custom_call.1']
    #allocation4 [shape = 's32[1]{0}', space=sflag, size = 0x4, scoped, tag = 'scoped memory for tpu_custom_call.1']
    #allocation5 [shape = 'u8[2048]{0}', space=vmem, size = 0x800, scoped, tag = 'output window, operand 0, single buffered']
    %7 = vsyncpa [#allocation3], 0
    %8 = vsyncpa [#allocation4], 0
    // Predicated region
    $region2: #{tpu_custom_call.1} parent=1 // pred_check
      _
    $region3: #{tpu_custom_call.1} parent=1 // pred_check_branch
      %10 = sbr.rel (0) target = $region5
    $region4: #{tpu_custom_call.1} parent=1 // pred_region
      %s12 = ssub.s32 64, 64
      %13 = vsyncadd [#allocation3], %s12
      %s15 = sshll.u32 [#allocation2], 4
      %s16 = int_to_ptr.vmem [resolvable:$true] %s15
      %18 = dma.hbm_to_vmem [thread:$0]  %s0, 64, %s16, [#allocation3]
    $region5: #{tpu_custom_call.1} parent=1 // pred_fallthru
      _
    // Predicated region
    $region6: #{tpu_custom_call.1} parent=1 // pred_check
      _
    $region7: #{tpu_custom_call.1} parent=1 // pred_check_branch
      %20 = sbr.rel (0) target = $region9
    $region8: #{tpu_custom_call.1} parent=1 // pred_region
      _
    $region9: #{tpu_custom_call.1} parent=1 // pred_fallthru
      _
    // Predicated region
    $region10: #{tpu_custom_call.1} parent=1 // pred_check
      _
    $region11: #{tpu_custom_call.1} parent=1 // pred_check_branch
      %22 = sbr.rel (0) target = $region13
    $region12: #{tpu_custom_call.1} parent=1 // pred_region
      %23 = dma.done [#allocation3], 64
    $region13: #{tpu_custom_call.1} parent=1 // pred_fallthru
      _
    %v24 = vld [vmem:[#allocation2] sm:$0xf]
    %v25 = vld [vmem:[%s1] sm:$0x3]
    %v27 = vlaneseq
    %v28 = vshrl.u32 %v27, 7
    %v29 = vsub.s32 0, %v28
    %v30 = vrot.slane %v25, %v29
    %v31 = vlaneseq
    %v32 = vshrl.u32 %v31, 7
    %v33 = vsub.s32 1, %v32
    %v34 = vrot.slane %v25, %v33
    %v35 = vcombine.low %v30, %v34
    %v37 = vunpack.c.l.s4 1983009808
    %v38 = vunpack.c.0.s8 %v37
    %v39 = vlaneseq
    %v40 = vshrl.u32 %v39, 7
    %v41 = vsub.s32 %v38, %v40
    %v42 = vrot.slane %v35, %v41
    %v44 = vadd.f32 %v24, %v42
    %45 = vst [vmem:[#allocation5] sm:$0xf] %v44
    // Predicated region
    $region14: #{tpu_custom_call.1} parent=1 // pred_check
      _
    $region15: #{tpu_custom_call.1} parent=1 // pred_check_branch
      %47 = sbr.rel (0) target = $region17
    $region16: #{tpu_custom_call.1} parent=1 // pred_region
      %s49 = ssub.s32 64, 64
      %50 = vsyncadd [#allocation4], %s49
      %s52 = sshll.u32 [#allocation5], 4
      %s53 = int_to_ptr.vmem [resolvable:$true] %s52
      %55 = dma.vmem_to_hbm [thread:$0]  %s53, 64, %s2, [#allocation4]
    $region17: #{tpu_custom_call.1} parent=1 // pred_fallthru
      _
    // Predicated region
    $region18: #{tpu_custom_call.1} parent=1 // pred_check
      _
    $region19: #{tpu_custom_call.1} parent=1 // pred_check_branch
      %57 = sbr.rel (0) target = $region21
    $region20: #{tpu_custom_call.1} parent=1 // pred_region
      %58 = dma.done [#allocation4], 64
    $region21: #{tpu_custom_call.1} parent=1 // pred_fallthru
      _
    %59 = vsyncpa [#allocation3], 1
    %60 = vsyncpa [#allocation4], 1

</llo_original>
